<compile_context>
chip_gen: v7x
topology: tpu7x:2x2x1
jax: 0.10.0
libtpu: 0.0.40
codegen_flags: <defaults>
</compile_context>

<pallas_src>
from functools import partial

import jax
import jax.numpy as jnp
from jax.experimental import pallas as pl
from jax.experimental.pallas import tpu as pltpu

IN_F = 2
HID = 10
OUT_F = 2

PROWS = HID + 1          # extra all-ones hidden row carries b2 through layer 2
NCOL1 = IN_F + 1         # layer-1 packed columns: [w1 row 0, w1 row 1, b1]


def _round_up(n, m):
    return ((n + m - 1) // m) * m


def pack_params(w1, b1, w2, b2):
    """Pack the 52 parameters into two tiny VMEM tiles.

    p1: (PROWS, 3)    rows 0..HID-1 = [w1[0,j], w1[1,j], b1[j]];
                      augmented row HID = [0, 0, 1]  (zero weights, bias 1 ->
                      relu == 1, which carries b2 through layer 2).
                      NOTE: qnet_kernel relies on this invariant — keep in sync.
    p2: (OUT_F, PROWS) = [w2^T | b2]  (b2 in the augmented last column).
    """
    w1 = jnp.asarray(w1, jnp.float32).reshape(IN_F, HID)
    b1 = jnp.asarray(b1, jnp.float32).reshape(HID)
    w2 = jnp.asarray(w2, jnp.float32).reshape(HID, OUT_F)
    b2 = jnp.asarray(b2, jnp.float32).reshape(OUT_F)

    p1 = jnp.concatenate(
        [
            jnp.stack([w1[0, :], w1[1, :], b1], axis=1),          # (HID, 3)
            jnp.array([[0.0] * IN_F + [1.0]], jnp.float32),       # (1, 3) aug
        ],
        axis=0,
    )                                                             # (PROWS, 3)
    p2 = jnp.concatenate([w2.T, b2[:, None]], axis=1)             # (OUT_F, PROWS)
    return p1, p2


def qnet_kernel(p1_ref, p2_ref, x_ref, o_ref):
    # p1_ref: (PROWS, NCOL1)  layer-1 packed params (VMEM-resident)
    # p2_ref: (OUT_F, PROWS)  layer-2 packed params (VMEM-resident)
    # x_ref : (IN_F, TB)      batch on the lane axis
    # o_ref : (OUT_F, TB)
    x0 = x_ref[0:1, :]                                   # (1, TB)
    x1 = x_ref[1:2, :]                                   # (1, TB)
    p1 = p1_ref[...]                                     # (PROWS, 3)

    # Layer 1: K=2 broadcast outer-product sum + bias, ReLU (pure VPU).
    # Row PROWS-1 has zero weights / bias 1 -> h[PROWS-1, :] == 1 after ReLU.
    h = jnp.maximum(
        p1[:, 0:1] * x0 + p1[:, 1:2] * x1 + p1[:, 2:3],
        0.0,
    )                                                    # (PROWS, TB)

    # Layer 2 on the MXU: (OUT_F, PROWS) @ (PROWS, TB); b2 folds in via the
    # all-ones augmented h row.  Single lane-dense output store.
    o_ref[...] = jnp.dot(
        p2_ref[...], h, preferred_element_type=jnp.float32
    ).astype(o_ref.dtype)


@partial(jax.jit, static_argnames=("block_b",))
def qnetwork_forward(x, w1, b1, w2, b2, *, block_b=65536):
    """y = relu(x @ w1 + b1) @ w2 + b2, x: (B, IN_F) -> (B, OUT_F)."""
    x = jnp.asarray(x, jnp.float32)
    B = x.shape[0]
    p1, p2 = pack_params(w1, b1, w2, b2)

    # ---- lane-tile / grid sizing -------------------------------------------
    # Round the caller's cap down to a multiple of 128 (lane alignment), pick
    # the number of grid steps first (>= 2 when there is work for both v7x
    # TensorCores), then derive the per-step tile.  Padding is < 128*grid_n.
    max_tb = max(128, (int(block_b) // 128) * 128)
    b128 = _round_up(B, 128)
    grid_n = pl.cdiv(b128, max_tb)
    if b128 >= 2 * 128:
        grid_n = max(grid_n, 2)
    tb = _round_up(pl.cdiv(b128, grid_n), 128)
    b_pad = tb * grid_n

    # Feature-major activations + lane padding (fused inside this jit).
    xt = jnp.pad(x.T, ((0, 0), (0, b_pad - B)))          # (IN_F, b_pad)

    cost = pl.CostEstimate(
        flops=100 * b_pad,                               # ~layer1 VPU + layer2 MXU
        transcendentals=0,
        bytes_accessed=(IN_F + OUT_F) * 4 * b_pad + 4 * (p1.size + p2.size),
    )

    out_t = pl.pallas_call(
        qnet_kernel,
        out_shape=jax.ShapeDtypeStruct((OUT_F, b_pad), jnp.float32),
        grid_spec=pltpu.PrefetchScalarGridSpec(
            num_scalar_prefetch=0,
            grid=(grid_n,),
            in_specs=[
                pl.BlockSpec((PROWS, NCOL1), lambda i: (0, 0)),   # params, resident
                pl.BlockSpec((OUT_F, PROWS), lambda i: (0, 0)),   # params, resident
                pl.BlockSpec((IN_F, tb), lambda i: (0, i)),       # x lane tile
            ],
            out_specs=pl.BlockSpec((OUT_F, tb), lambda i: (0, i)),
        ),
        compiler_params=pltpu.CompilerParams(
            dimension_semantics=("parallel",),           # batch splits across TCs
            vmem_limit_bytes=48 * 1024 * 1024,           # headroom for big lane tiles
        ),
        cost_estimate=cost,
    )(p1, p2, xt)

    # Slice away lane padding and return batch-major (fuses inside this jit).
    return out_t[:, :B].T                                # (B, OUT_F)


def init_params(key):
    """Deterministic init mimicking PyTorch's default Linear init
    (uniform(-1/sqrt(fan_in), 1/sqrt(fan_in))); weights stored pre-transposed
    as (in_features, out_features)."""
    k1, k2, k3, k4 = jax.random.split(key, 4)
    bound1 = 1.0 / jnp.sqrt(jnp.float32(IN_F))
    bound2 = 1.0 / jnp.sqrt(jnp.float32(HID))
    w1 = jax.random.uniform(k1, (IN_F, HID), jnp.float32, -bound1, bound1)
    b1 = jax.random.uniform(k2, (HID,), jnp.float32, -bound1, bound1)
    w2 = jax.random.uniform(k3, (HID, OUT_F), jnp.float32, -bound2, bound2)
    b2 = jax.random.uniform(k4, (OUT_F,), jnp.float32, -bound2, bound2)
    return w1, b1, w2, b2


if __name__ == "__main__":
    key = jax.random.PRNGKey(0)
    kx, kp = jax.random.split(key)
    w1, b1, w2, b2 = init_params(kp)

    # Small batch (RL single-step), a non-lane-aligned batch, and a batch
    # large enough to exercise the multi-block (>= 2 grid steps) path.
    for B in (8, 200, 1000):
        kx, sub = jax.random.split(kx)
        x = jax.random.normal(sub, (B, IN_F), jnp.float32)

        out = jax.block_until_ready(qnetwork_forward(x, w1, b1, w2, b2))

        ref = jnp.maximum(x @ w1 + b1[None, :], 0.0) @ w2 + b2[None, :]
        assert out.shape == (B, OUT_F)
        assert jnp.allclose(out, ref, atol=1e-5, rtol=1e-5)

    print("KERNEL_OK")
</pallas_src>

<mosaic_0001>
module attributes {stable_mosaic.version = 11 : i64} {
  func.func @qnet_kernel(%arg0: i32, %arg1: memref<11x3xf32, #tpu.memory_space<vmem>>, %arg2: memref<2x11xf32, #tpu.memory_space<vmem>>, %arg3: memref<2x128xf32, #tpu.memory_space<vmem>>, %arg4: memref<2x128xf32, #tpu.memory_space<vmem>>) attributes {dimension_semantics = [#tpu.dimension_semantics<parallel>], iteration_bounds = array<i64: 1>, scalar_prefetch = 0 : i64, scratch_operands = 0 : i64, tpu.core_type = #tpu.core_type<tc>, window_params = [{pipeline_mode = #tpu.pipeline_mode<synchronous>, transform_indices = @transform_0, window_bounds = array<i64: 11, 3>}, {pipeline_mode = #tpu.pipeline_mode<synchronous>, transform_indices = @transform_1, window_bounds = array<i64: 2, 11>}, {transform_indices = @transform_2, window_bounds = array<i64: 2, 128>}, {transform_indices = @transform_3, window_bounds = array<i64: 2, 128>}]} {
    %c0 = arith.constant 0 : index
    %c0_0 = arith.constant 0 : index
    %0 = vector.load %arg3[%c0, %c0_0] : memref<2x128xf32, #tpu.memory_space<vmem>>, vector<1x128xf32>
    %c1 = arith.constant 1 : index
    %c0_1 = arith.constant 0 : index
    %1 = vector.load %arg3[%c1, %c0_1] : memref<2x128xf32, #tpu.memory_space<vmem>>, vector<1x128xf32>
    %c0_2 = arith.constant 0 : index
    %c0_3 = arith.constant 0 : index
    %2 = vector.load %arg1[%c0_2, %c0_3] : memref<11x3xf32, #tpu.memory_space<vmem>>, vector<11x3xf32>
    %3 = vector.extract_strided_slice %2 {offsets = [0, 0], sizes = [11, 1], strides = [1, 1]} : vector<11x3xf32> to vector<11x1xf32>
    %4 = vector.broadcast %3 : vector<11x1xf32> to vector<11x128xf32>
    %5 = vector.broadcast %0 : vector<1x128xf32> to vector<11x128xf32>
    %6 = arith.mulf %4, %5 : vector<11x128xf32>
    %7 = vector.extract_strided_slice %2 {offsets = [0, 1], sizes = [11, 1], strides = [1, 1]} : vector<11x3xf32> to vector<11x1xf32>
    %8 = vector.broadcast %7 : vector<11x1xf32> to vector<11x128xf32>
    %9 = vector.broadcast %1 : vector<1x128xf32> to vector<11x128xf32>
    %10 = arith.mulf %8, %9 : vector<11x128xf32>
    %11 = arith.addf %6, %10 : vector<11x128xf32>
    %12 = vector.extract_strided_slice %2 {offsets = [0, 2], sizes = [11, 1], strides = [1, 1]} : vector<11x3xf32> to vector<11x1xf32>
    %13 = vector.broadcast %12 : vector<11x1xf32> to vector<11x128xf32>
    %14 = arith.addf %11, %13 : vector<11x128xf32>
    %cst = arith.constant 0.000000e+00 : f32
    %15 = vector.broadcast %cst : f32 to vector<11x128xf32>
    %16 = arith.maximumf %14, %15 : vector<11x128xf32>
    %c0_4 = arith.constant 0 : index
    %c0_5 = arith.constant 0 : index
    %17 = vector.load %arg2[%c0_4, %c0_5] : memref<2x11xf32, #tpu.memory_space<vmem>>, vector<2x11xf32>
    %cst_6 = arith.constant dense<0.000000e+00> : vector<2x128xf32>
    %18 = tpu.matmul %17, %16, %cst_6 {dimension_numbers = #tpu.dot_dimension_numbers<[1], [0], [0], [1], [0, 0, 1, 1], [], []>} : vector<2x11xf32>, vector<11x128xf32>, vector<2x128xf32> -> vector<2x128xf32>
    %c0_7 = arith.constant 0 : index
    %c0_8 = arith.constant 0 : index
    %19 = vector.load %arg4[%c0_7, %c0_8] : memref<2x128xf32, #tpu.memory_space<vmem>>, vector<2x128xf32>
    tpu.vector_store %arg4[%c0_7, %c0_8], %18 {strides = array<i32>} : memref<2x128xf32, #tpu.memory_space<vmem>>, vector<2x128xf32>,
    return
  }
  func.func @transform_0(%arg0: i32) -> (i32, i32) {
    %c0_i32 = arith.constant 0 : i32
    %c0_i32_0 = arith.constant 0 : i32
    %c0_i32_1 = arith.constant 0 : i32
    return %c0_i32, %c0_i32_0 : i32, i32
  }
  func.func @transform_1(%arg0: i32) -> (i32, i32) {
    %c0_i32 = arith.constant 0 : i32
    %c0_i32_0 = arith.constant 0 : i32
    %c0_i32_1 = arith.constant 0 : i32
    return %c0_i32, %c0_i32_0 : i32, i32
  }
  func.func @transform_2(%arg0: i32) -> (i32, i32) {
    %c0_i32 = arith.constant 0 : i32
    %c0_i32_0 = arith.constant 0 : i32
    return %c0_i32, %arg0 : i32, i32
  }
  func.func @transform_3(%arg0: i32) -> (i32, i32) {
    %c0_i32 = arith.constant 0 : i32
    %c0_i32_0 = arith.constant 0 : i32
    return %c0_i32, %arg0 : i32, i32
  }
}

</mosaic_0001>

<llo_original>
// kernel: qnetwork_forward.1
$region0: #{qnetwork_forward.1}
  #allocation0 [shape = 'u32[]', space=smem, size = 0x4, offset = 0x4, fixed_abs, tag = 'smem constant byte address 0x4 - core index']
  #allocation1 [shape = 'u32[144,128]{1,0:T(1,128)}', space=vmem, size = 0x12000, scoped, tag = 'internal scratch']
  %s0 = inlined_call_operand.vmem [shape: f32[11,3], index: 0, kind: input, shape index: {}]
  %s1 = inlined_call_operand.vmem [shape: f32[2,11], index: 1, kind: input, shape index: {}]
  %s2 = inlined_call_operand.vmem [shape: f32[2,128], index: 2, kind: input, shape index: {}]
  %s3 = inlined_call_operand.vmem [shape: f32[2,128], index: 3, kind: output, shape index: {}]
  %s4 = sld [smem:[#allocation0]]
  $region22: #{qnetwork_forward.1} parent=0
    _
  %s6 = ssub.s32 1, %s4
  %s7 = scalar_select 0, %s6, %s4
  // Predicated region
  $region2: #{qnetwork_forward.1} parent=0 // pred_check
    _
  $region3: #{qnetwork_forward.1} parent=0 // pred_check_branch
    %9 = sbr.rel (0) target = $region5
  $region4: #{qnetwork_forward.1} parent=0 // pred_region
    _
  $region5: #{qnetwork_forward.1} parent=0 // pred_fallthru
    _
  // Predicated region
  $region6: #{qnetwork_forward.1} parent=0 // pred_check
    _
  $region7: #{qnetwork_forward.1} parent=0 // pred_check_branch
    %11 = sbr.rel (0) target = $region9
  $region8: #{qnetwork_forward.1} parent=0 // pred_region
    _
  $region9: #{qnetwork_forward.1} parent=0 // pred_fallthru
    _
  // Predicated region
  $region10: #{qnetwork_forward.1} parent=0 // pred_check
    _
  $region11: #{qnetwork_forward.1} parent=0 // pred_check_branch
    %13 = sbr.rel (0) target = $region13
  $region12: #{qnetwork_forward.1} parent=0 // pred_region
    _
  $region13: #{qnetwork_forward.1} parent=0 // pred_fallthru
    _
  %v14 = vld [vmem:[%s2] sm:$0x1]
  %v15 = vld [vmem:[%s2 + $0x1] sm:$0x1]
  %v16 = vld [vmem:[%s0] sm:$0xff]
  %v17 = vld [vmem:[%s0 + $0x8] sm:$0x7]
  %19 = vset.pattern.permute.xlu0 0
  %20 = vperm.xlu0 %19, %v16
  %v21 = vpop.permute.xlu0 %20
  %24 = vset.pattern.permute.xlu0 0
  %25 = vperm.xlu0 %24, %v17
  %v26 = vpop.permute.xlu0 %25
  %v28 = vlaneseq
  %v29 = vshrl.u32 %v28, 7
  %v30 = vsub.s32 0, %v29
  %v31 = vrot.slane %v14, %v30
  %v32 = vmul.f32 %v21, %v31
  %v33 = vmul.f32 %v26, %v31
  %34 = vset.pattern.permute.xlu0 1
  %35 = vperm.xlu0 %34, %v16
  %v36 = vpop.permute.xlu0 %35
  %38 = vset.pattern.permute.xlu0 1
  %39 = vperm.xlu0 %38, %v17
  %v40 = vpop.permute.xlu0 %39
  %v42 = vlaneseq
  %v43 = vshrl.u32 %v42, 7
  %v44 = vsub.s32 0, %v43
  %v45 = vrot.slane %v15, %v44
  %v46 = vmul.f32 %v36, %v45
  %v47 = vmul.f32 %v40, %v45
  %v48 = vadd.f32 %v32, %v46
  %v49 = vadd.f32 %v33, %v47
  %50 = vset.pattern.permute.xlu0 2
  %51 = vperm.xlu0 %50, %v16
  %v52 = vpop.permute.xlu0 %51
  %54 = vset.pattern.permute.xlu0 2
  %55 = vperm.xlu0 %54, %v17
  %v56 = vpop.permute.xlu0 %55
  %v58 = vadd.f32 %v48, %v52
  %v59 = vadd.f32 %v49, %v56
  %v60 = vmax.f32 %v58, 0.0
  %v61 = vmax.f32 %v59, 0.0
  %v62 = vld [vmem:[%s1] sm:$0x3]
  %vm63 = vcmask 89088
  %v65 = vsel %vm63, %v62, 0
  %vm67 = vcmask 1042432
  %v69 = vsel %vm67, %v61, 0
  %71 = vmatprep.subr.mxu0 0.0
  %72 = vmatpush1.msra.mxu0 %v60
  %73 = vmatprep.subr.mxu0 0.0
  %74 = vmatpush1.msra.mxu0 %v69
  %75 = vmatprep.subr.mxu0 0.0
  %76 = vmatpush1.msra.mxu0 0.0
  %77 = vmatprep.subr.mxu0 0.0
  %78 = vmatpush1.msra.mxu0 0.0
  %79 = vmatprep.subr.mxu0 0.0
  %80 = vmatpush1.msra.mxu0 0.0
  %81 = vmatprep.subr.mxu0 0.0
  %82 = vmatpush1.msra.mxu0 0.0
  %83 = vmatprep.subr.mxu0 0.0
  %84 = vmatpush1.msra.mxu0 0.0
  %85 = vmatprep.subr.mxu0 0.0
  %86 = vmatpush1.msra.mxu0 0.0
  %87 = vmatprep.subr.mxu0 0.0
  %88 = vmatpush1.msra.mxu0 0.0
  %89 = vmatprep.subr.mxu0 0.0
  %90 = vmatpush1.msra.mxu0 0.0
  %91 = vmatprep.subr.mxu0 0.0
  %92 = vmatpush1.msra.mxu0 0.0
  %93 = vmatprep.subr.mxu0 0.0
  %94 = vmatpush1.msra.mxu0 0.0
  %95 = vmatprep.subr.mxu0 0.0
  %96 = vmatpush1.msra.mxu0 0.0
  %97 = vmatprep.subr.mxu0 0.0
  %98 = vmatpush1.msra.mxu0 0.0
  %99 = vmatprep.subr.mxu0 0.0
  %100 = vmatpush1.msra.mxu0 0.0
  %101 = vmatprep.subr.mxu0 0.0
  %102 = vmatpush1.msra.mxu0 0.0
  %103 = vmatprep.subr.mxu0 0.0
  %104 = vmatpush1.msra.mxu0 0.0
  %105 = vmatprep.subr.mxu0 0.0
  %106 = vmatpush1.msra.mxu0 0.0
  %107 = vmatprep.subr.mxu0 0.0
  %108 = vmatpush1.msra.mxu0 0.0
  %109 = vmatprep.subr.mxu0 0.0
  %110 = vmatpush1.msra.mxu0 0.0
  %111 = vmatprep.subr.mxu0 0.0
  %112 = vmatpush1.msra.mxu0 0.0
  %113 = vmatprep.subr.mxu0 0.0
  %114 = vmatpush1.msra.mxu0 0.0
  %115 = vmatprep.subr.mxu0 0.0
  %116 = vmatpush1.msra.mxu0 0.0
  %117 = vmatprep.subr.mxu0 0.0
  %118 = vmatpush1.msra.mxu0 0.0
  %119 = vmatprep.subr.mxu0 0.0
  %120 = vmatpush1.msra.mxu0 0.0
  %121 = vmatprep.subr.mxu0 0.0
  %122 = vmatpush1.msra.mxu0 0.0
  %123 = vmatprep.subr.mxu0 0.0
  %124 = vmatpush1.msra.mxu0 0.0
  %125 = vmatprep.subr.mxu0 0.0
  %126 = vmatpush1.msra.mxu0 0.0
  %127 = vmatprep.subr.mxu0 0.0
  %128 = vmatpush1.msra.mxu0 0.0
  %129 = vmatprep.subr.mxu0 0.0
  %130 = vmatpush1.msra.mxu0 0.0
  %131 = vmatprep.subr.mxu0 0.0
  %132 = vmatpush1.msra.mxu0 0.0
  %133 = vmatprep.subr.mxu0 0.0
  %134 = vmatpush1.msra.mxu0 0.0
  %135 = vmatprep.mubr.f32.mxu0 0.0
  %136 = vmatmul.mubr.f32.gmra.mrb[0].mxu0 %v65
  %v137 = vpop.f32.mrb[0].mxu0
  %v138 = vadd.f32 0.0, %v137
  %v139 = vpop.f32.mrb[0].mxu0
  %140 = vdwg.mxu0
  %141 = vst [vmem:[%s3] sm:$0x3] %v138
  // Predicated region
  $region14: #{qnetwork_forward.1} parent=0 // pred_check
    _
  $region15: #{qnetwork_forward.1} parent=0 // pred_check_branch
    %143 = sbr.rel (0) target = $region17
  $region16: #{qnetwork_forward.1} parent=0 // pred_region
    _
  $region17: #{qnetwork_forward.1} parent=0 // pred_fallthru
    _
  // Predicated region
  $region18: #{qnetwork_forward.1} parent=0 // pred_check
    _
  $region19: #{qnetwork_forward.1} parent=0 // pred_check_branch
    %145 = sbr.rel (0) target = $region21
  $region20: #{qnetwork_forward.1} parent=0 // pred_region
    _
  $region21: #{qnetwork_forward.1} parent=0 // pred_fallthru
    _

</llo_original>
